<compile_context>
chip_gen: v7x
topology: tpu7x:2x2x1
jax: 0.10.0
libtpu: 0.0.40
codegen_flags: <defaults>
</compile_context>

<pallas_src>
import jax
import jax.numpy as jnp
from jax.experimental import pallas as pl
from jax.experimental.pallas import tpu as pltpu


def mf_kernel(user_idx_ref, item_idx_ref,   # SMEM scalar prefetch: (B_pad,) int32
              bias_ref,                      # VMEM (1, TB) f32: ub + ib (wrapper-gathered)
              ue_hbm, ie_hbm,                # ANY/HBM: (n_users, E), (n_items, E) tables
              o_ref,                         # VMEM (1, TB) f32 output block
              ue_buf, ie_buf,                # VMEM scratch: (TB, E)
              sem):                          # DMA semaphores: (2,)
    tb = ue_buf.shape[0]
    base = pl.program_id(0) * tb

    # Issue one row DMA per gathered embedding row (2*TB copies in flight).
    # Note: like the fused gather, out-of-range indices are not checked here
    # (torch's Embedding would raise).
    @pl.loop(0, tb)
    def _issue(r):
        u = user_idx_ref[base + r]
        i = item_idx_ref[base + r]
        pltpu.make_async_copy(ue_hbm.at[u], ue_buf.at[r], sem.at[0]).start()
        pltpu.make_async_copy(ie_hbm.at[i], ie_buf.at[r], sem.at[1]).start()

    # Wait for all row copies (one row-sized wait per issued copy).
    @pl.loop(0, tb)
    def _wait(r):
        pltpu.make_async_copy(ue_hbm.at[0], ue_buf.at[0], sem.at[0]).wait()
        pltpu.make_async_copy(ie_hbm.at[0], ie_buf.at[0], sem.at[1]).wait()

    ue = ue_buf[...].astype(jnp.float32)
    ie = ie_buf[...].astype(jnp.float32)
    dot = jnp.sum(ue * ie, axis=1)                 # (TB,) — VPU mul + reduce, no MXU
    o_ref[...] = bias_ref[...] + dot[None, :]      # lane-dense (1, TB) store


def _round_up(x, m):
    return (x + m - 1) // m * m


def mf_forward(user_biases, item_biases, user_emb, item_emb, user, item,
               *, tile_b=512):
    """Pallas-backed equivalent of MFTrace.forward."""
    B = user.shape[0]
    E = user_emb.shape[1]

    # Collapse the two tiny bias gathers in the wrapper (4 bytes/row) into one
    # lane-dense array; the heavy (B, E) gathers are fused into the kernel.
    bias = (user_biases[user, 0] + item_biases[item, 0]).astype(jnp.float32)

    TB = min(tile_b, _round_up(B, 128))
    B_pad = _round_up(B, TB)
    pad = B_pad - B

    user_p = jnp.pad(user.astype(jnp.int32), (0, pad))   # padded rows gather row 0
    item_p = jnp.pad(item.astype(jnp.int32), (0, pad))
    bias_p = jnp.pad(bias, (0, pad)).reshape(1, B_pad)

    itemsize = jnp.dtype(user_emb.dtype).itemsize

    out = pl.pallas_call(
        mf_kernel,
        out_shape=jax.ShapeDtypeStruct((1, B_pad), jnp.float32),
        grid_spec=pltpu.PrefetchScalarGridSpec(
            num_scalar_prefetch=2,
            grid=(B_pad // TB,),
            in_specs=[
                pl.BlockSpec((1, TB), lambda t, u, i: (0, t)),   # fused bias
                pl.BlockSpec(memory_space=pl.ANY),               # user_emb table (HBM)
                pl.BlockSpec(memory_space=pl.ANY),               # item_emb table (HBM)
            ],
            out_specs=pl.BlockSpec((1, TB), lambda t, u, i: (0, t)),
            scratch_shapes=[
                pltpu.VMEM((TB, E), user_emb.dtype),
                pltpu.VMEM((TB, E), item_emb.dtype),
                pltpu.SemaphoreType.DMA((2,)),
            ],
        ),
        compiler_params=pltpu.CompilerParams(
            dimension_semantics=("parallel",)),
        cost_estimate=pl.CostEstimate(
            flops=2 * B_pad * E,
            transcendentals=0,
            bytes_accessed=2 * B_pad * E * itemsize + 8 * B_pad),
    )(user_p, item_p, bias_p, user_emb, item_emb)

    # Drop batch padding; torch's .squeeze() on (B, 1) -> (B,)
    return out[0, :B]


def xavier_normal(key, shape):
    fan_out, fan_in = shape
    std = (2.0 / (fan_in + fan_out)) ** 0.5
    return std * jax.random.normal(key, shape, dtype=jnp.float32)


if __name__ == "__main__":
    num_users, num_items, emb_size = 16, 24, 32
    batch = 8

    key = jax.random.PRNGKey(0)
    k_ub, k_ib, k_ue, k_ie, k_u, k_i = jax.random.split(key, 6)

    # Deterministic xavier-normal-style init (synthetic weights).
    user_biases = xavier_normal(k_ub, (num_users, 1))
    item_biases = xavier_normal(k_ib, (num_items, 1))
    user_emb = xavier_normal(k_ue, (num_users, emb_size))
    item_emb = xavier_normal(k_ie, (num_items, emb_size))

    user = jax.random.randint(k_u, (batch,), 0, num_users, dtype=jnp.int32)
    item = jax.random.randint(k_i, (batch,), 0, num_items, dtype=jnp.int32)

    pred = mf_forward(user_biases, item_biases, user_emb, item_emb, user, item)
    pred = jax.block_until_ready(pred)

    # Pure-JAX reference check.
    ref = (
        user_biases[user, 0]
        + item_biases[item, 0]
        + jnp.sum(user_emb[user] * item_emb[item], axis=1)
    )
    assert pred.shape == (batch,)
    assert jnp.allclose(pred, ref, atol=1e-5), (pred, ref)

    print("KERNEL_OK")
</pallas_src>

<mosaic_0001>
module attributes {stable_mosaic.version = 11 : i64} {
  func.func @mf_kernel(%arg0: i32, %arg1: memref<128xi32, #tpu.memory_space<smem>>, %arg2: memref<128xi32, #tpu.memory_space<smem>>, %arg3: memref<1x128xf32, #tpu.memory_space<vmem>>, %arg4: memref<16x32xf32, #tpu.memory_space<any>>, %arg5: memref<24x32xf32, #tpu.memory_space<any>>, %arg6: memref<1x128xf32, #tpu.memory_space<vmem>>, %arg7: memref<128x32xf32, #tpu.memory_space<vmem>>, %arg8: memref<128x32xf32, #tpu.memory_space<vmem>>, %arg9: memref<2x!tpu.dma_semaphore, #tpu.memory_space<semaphore_mem>>) attributes {dimension_semantics = [#tpu.dimension_semantics<parallel>], iteration_bounds = array<i64: 1>, scalar_prefetch = 2 : i64, scratch_operands = 3 : i64, tpu.core_type = #tpu.core_type<tc>, window_params = [{transform_indices = @transform_0, window_bounds = array<i64: 1, 128>}, {}, {}, {transform_indices = @transform_3, window_bounds = array<i64: 1, 128>}]} {
    %c128_i32 = arith.constant 128 : i32
    %0 = arith.muli %arg0, %c128_i32 : i32
    %c0_i32 = arith.constant 0 : i32
    %c128_i32_0 = arith.constant 128 : i32
    %1 = arith.addi %c0_i32, %c128_i32_0 : i32
    %c1_i32 = arith.constant 1 : i32
    scf.for %arg10 = %c0_i32 to %1 step %c1_i32  : i32 {
      %c1_i32_12 = arith.constant 1 : i32
      %11 = arith.muli %arg10, %c1_i32_12 : i32
      %c0_i32_13 = arith.constant 0 : i32
      %12 = arith.addi %c0_i32_13, %11 : i32
      %13 = arith.addi %0, %12 : i32
      %14 = arith.index_cast %13 : i32 to index
      %15 = memref.load %arg1[%14] : memref<128xi32, #tpu.memory_space<smem>>
      %16 = arith.addi %0, %12 : i32
      %17 = arith.index_cast %16 : i32 to index
      %18 = memref.load %arg2[%17] : memref<128xi32, #tpu.memory_space<smem>>
      %c0_i32_14 = arith.constant 0 : i32
      %c0_i32_15 = arith.constant 0 : i32
      %19 = tpu.memref_slice %arg4[%15, %c0_i32_15] : memref<16x32xf32, #tpu.memory_space<any>> -> memref<1x32xf32, #tpu.memory_space<any>>
      %20 = tpu.memref_squeeze %19 : memref<1x32xf32, #tpu.memory_space<any>> -> memref<32xf32, #tpu.memory_space<any>>
      %c0_i32_16 = arith.constant 0 : i32
      %21 = tpu.memref_slice %arg7[%12, %c0_i32_16] : memref<128x32xf32, #tpu.memory_space<vmem>> -> memref<1x32xf32, #tpu.memory_space<vmem>>
      %22 = tpu.memref_squeeze %21 : memref<1x32xf32, #tpu.memory_space<vmem>> -> memref<32xf32, #tpu.memory_space<vmem>>
      %23 = tpu.memref_slice %arg9[%c0_i32_14] : memref<2x!tpu.dma_semaphore, #tpu.memory_space<semaphore_mem>> -> memref<1x!tpu.dma_semaphore, #tpu.memory_space<semaphore_mem>>
      %24 = tpu.memref_squeeze %23 : memref<1x!tpu.dma_semaphore, #tpu.memory_space<semaphore_mem>> -> memref<!tpu.dma_semaphore, #tpu.memory_space<semaphore_mem>>
      tpu.enqueue_dma source(%20 : memref<32xf32, #tpu.memory_space<any>>) target(%22 : memref<32xf32, #tpu.memory_space<vmem>>) target_semaphore(%24 : memref<!tpu.dma_semaphore, #tpu.memory_space<semaphore_mem>>)
      %c1_i32_17 = arith.constant 1 : i32
      %c0_i32_18 = arith.constant 0 : i32
      %25 = tpu.memref_slice %arg5[%18, %c0_i32_18] : memref<24x32xf32, #tpu.memory_space<any>> -> memref<1x32xf32, #tpu.memory_space<any>>
      %26 = tpu.memref_squeeze %25 : memref<1x32xf32, #tpu.memory_space<any>> -> memref<32xf32, #tpu.memory_space<any>>
      %c0_i32_19 = arith.constant 0 : i32
      %27 = tpu.memref_slice %arg8[%12, %c0_i32_19] : memref<128x32xf32, #tpu.memory_space<vmem>> -> memref<1x32xf32, #tpu.memory_space<vmem>>
      %28 = tpu.memref_squeeze %27 : memref<1x32xf32, #tpu.memory_space<vmem>> -> memref<32xf32, #tpu.memory_space<vmem>>
      %29 = tpu.memref_slice %arg9[%c1_i32_17] : memref<2x!tpu.dma_semaphore, #tpu.memory_space<semaphore_mem>> -> memref<1x!tpu.dma_semaphore, #tpu.memory_space<semaphore_mem>>
      %30 = tpu.memref_squeeze %29 : memref<1x!tpu.dma_semaphore, #tpu.memory_space<semaphore_mem>> -> memref<!tpu.dma_semaphore, #tpu.memory_space<semaphore_mem>>
      tpu.enqueue_dma source(%26 : memref<32xf32, #tpu.memory_space<any>>) target(%28 : memref<32xf32, #tpu.memory_space<vmem>>) target_semaphore(%30 : memref<!tpu.dma_semaphore, #tpu.memory_space<semaphore_mem>>)
    }
    %c128_i32_1 = arith.constant 128 : i32
    %c0_i32_2 = arith.constant 0 : i32
    %c128_i32_3 = arith.constant 128 : i32
    %2 = arith.addi %c0_i32_2, %c128_i32_3 : i32
    %c1_i32_4 = arith.constant 1 : i32
    scf.for %arg10 = %c0_i32_2 to %2 step %c1_i32_4  : i32 {
      %c0_i32_12 = arith.constant 0 : i32
      %c0_i32_13 = arith.constant 0 : i32
      %c0_i32_14 = arith.constant 0 : i32
      %c0_i32_15 = arith.constant 0 : i32
      %11 = tpu.memref_slice %arg4[%c0_i32_12, %c0_i32_15] : memref<16x32xf32, #tpu.memory_space<any>> -> memref<1x32xf32, #tpu.memory_space<any>>
      %12 = tpu.memref_squeeze %11 : memref<1x32xf32, #tpu.memory_space<any>> -> memref<32xf32, #tpu.memory_space<any>>
      %c0_i32_16 = arith.constant 0 : i32
      %13 = tpu.memref_slice %arg7[%c0_i32_13, %c0_i32_16] : memref<128x32xf32, #tpu.memory_space<vmem>> -> memref<1x32xf32, #tpu.memory_space<vmem>>
      %14 = tpu.memref_squeeze %13 : memref<1x32xf32, #tpu.memory_space<vmem>> -> memref<32xf32, #tpu.memory_space<vmem>>
      %15 = tpu.memref_slice %arg9[%c0_i32_14] : memref<2x!tpu.dma_semaphore, #tpu.memory_space<semaphore_mem>> -> memref<1x!tpu.dma_semaphore, #tpu.memory_space<semaphore_mem>>
      %16 = tpu.memref_squeeze %15 : memref<1x!tpu.dma_semaphore, #tpu.memory_space<semaphore_mem>> -> memref<!tpu.dma_semaphore, #tpu.memory_space<semaphore_mem>>
      tpu.wait_dma2 semaphore(%16 : memref<!tpu.dma_semaphore, #tpu.memory_space<semaphore_mem>>) src(%12 : memref<32xf32, #tpu.memory_space<any>>) dst(%14 : memref<32xf32, #tpu.memory_space<vmem>>)
      %c0_i32_17 = arith.constant 0 : i32
      %c0_i32_18 = arith.constant 0 : i32
      %c1_i32_19 = arith.constant 1 : i32
      %c0_i32_20 = arith.constant 0 : i32
      %17 = tpu.memref_slice %arg5[%c0_i32_17, %c0_i32_20] : memref<24x32xf32, #tpu.memory_space<any>> -> memref<1x32xf32, #tpu.memory_space<any>>
      %18 = tpu.memref_squeeze %17 : memref<1x32xf32, #tpu.memory_space<any>> -> memref<32xf32, #tpu.memory_space<any>>
      %c0_i32_21 = arith.constant 0 : i32
      %19 = tpu.memref_slice %arg8[%c0_i32_18, %c0_i32_21] : memref<128x32xf32, #tpu.memory_space<vmem>> -> memref<1x32xf32, #tpu.memory_space<vmem>>
      %20 = tpu.memref_squeeze %19 : memref<1x32xf32, #tpu.memory_space<vmem>> -> memref<32xf32, #tpu.memory_space<vmem>>
      %21 = tpu.memref_slice %arg9[%c1_i32_19] : memref<2x!tpu.dma_semaphore, #tpu.memory_space<semaphore_mem>> -> memref<1x!tpu.dma_semaphore, #tpu.memory_space<semaphore_mem>>
      %22 = tpu.memref_squeeze %21 : memref<1x!tpu.dma_semaphore, #tpu.memory_space<semaphore_mem>> -> memref<!tpu.dma_semaphore, #tpu.memory_space<semaphore_mem>>
      tpu.wait_dma2 semaphore(%22 : memref<!tpu.dma_semaphore, #tpu.memory_space<semaphore_mem>>) src(%18 : memref<32xf32, #tpu.memory_space<any>>) dst(%20 : memref<32xf32, #tpu.memory_space<vmem>>)
    }
    %c0 = arith.constant 0 : index
    %c0_5 = arith.constant 0 : index
    %3 = vector.load %arg7[%c0, %c0_5] : memref<128x32xf32, #tpu.memory_space<vmem>>, vector<128x32xf32>
    %c0_6 = arith.constant 0 : index
    %c0_7 = arith.constant 0 : index
    %4 = vector.load %arg8[%c0_6, %c0_7] : memref<128x32xf32, #tpu.memory_space<vmem>>, vector<128x32xf32>
    %5 = arith.mulf %3, %4 : vector<128x32xf32>
    %cst = arith.constant dense<0.000000e+00> : vector<128xf32>
    %6 = vector.multi_reduction <add>, %5, %cst [1] : vector<128x32xf32> to vector<128xf32>
    %c0_8 = arith.constant 0 : index
    %c0_9 = arith.constant 0 : index
    %7 = vector.load %arg3[%c0_8, %c0_9] : memref<1x128xf32, #tpu.memory_space<vmem>>, vector<1x128xf32>
    %8 = vector.shape_cast %6 : vector<128xf32> to vector<1x128xf32>
    %9 = arith.addf %7, %8 : vector<1x128xf32>
    %c0_10 = arith.constant 0 : index
    %c0_11 = arith.constant 0 : index
    %10 = vector.load %arg6[%c0_10, %c0_11] : memref<1x128xf32, #tpu.memory_space<vmem>>, vector<1x128xf32>
    tpu.vector_store %arg6[%c0_10, %c0_11], %9 {strides = array<i32>} : memref<1x128xf32, #tpu.memory_space<vmem>>, vector<1x128xf32>,
    return
  }
  func.func @transform_0(%arg0: i32, %arg1: memref<128xi32, #tpu.memory_space<smem>>, %arg2: memref<128xi32, #tpu.memory_space<smem>>) -> (i32, i32) {
    %c0_i32 = arith.constant 0 : i32
    %c0_i32_0 = arith.constant 0 : i32
    return %c0_i32, %arg0 : i32, i32
  }
  func.func @transform_3(%arg0: i32, %arg1: memref<128xi32, #tpu.memory_space<smem>>, %arg2: memref<128xi32, #tpu.memory_space<smem>>) -> (i32, i32) {
    %c0_i32 = arith.constant 0 : i32
    %c0_i32_0 = arith.constant 0 : i32
    return %c0_i32, %arg0 : i32, i32
  }
}

</mosaic_0001>

<llo_original>
// kernel: tpu_custom_call.1
$region0: #{tpu_custom_call.1}
  #allocation0 [shape = 'u32[]', space=smem, size = 0x4, offset = 0x4, fixed_abs, tag = 'smem constant byte address 0x4 - core index']
  #allocation1 [shape = 'u32[144,128]{1,0:T(1,128)}', space=vmem, size = 0x12000, scoped, tag = 'internal scratch']
  #allocation2 [shape = 'f32[128,32]{1,0:T(8,128)}', space=vmem, size = 0x10000, scoped, tag = 'scratch operand']
  #allocation3 [shape = 'f32[128,32]{1,0:T(8,128)}', space=vmem, size = 0x10000, scoped, tag = 'scratch operand']
  #allocation4 [shape = 's32[2]{0}', space=sflag, size = 0x8, scoped, tag = 'scratch operand']
  #allocation5 [shape = 's32[1]{0}', space=sflag, size = 0x4, scoped, tag = 'scoped memory for tpu_custom_call.1']
  #allocation6 [shape = 'u8[512]{0}', space=smem, size = 0x200, scoped, tag = 'prefetched SMEM operand 0']
  #allocation7 [shape = 'u8[512]{0}', space=smem, size = 0x200, scoped, tag = 'prefetched SMEM operand 1']
  #allocation10 [shape = 's32[]', space=sflag, size = 0x4, offset = 0, fixed_abs, tag = 'sflag constant byte address 0x0 - dummy sync flag']
  #allocation11 [shape = 's32[]', space=sflag, size = 0x4, offset = 0, fixed_abs, tag = 'sflag constant byte address 0x0 - dummy sync flag']
  #allocation12 [shape = 'u32[]', space=smem, size = 0x4, offset = 0x44, fixed_abs, tag = 'smem constant byte address 0x44 - assertion arg 0']
  #allocation13 [shape = 'u32[]', space=smem, size = 0x4, offset = 0x48, fixed_abs, tag = 'smem constant byte address 0x48 - assertion arg 1']
  #allocation14 [shape = 's32[]', space=sflag, size = 0x4, offset = 0, fixed_abs, tag = 'sflag constant byte address 0x0 - dummy sync flag']
  #allocation15 [shape = 's32[]', space=sflag, size = 0x4, offset = 0, fixed_abs, tag = 'sflag constant byte address 0x0 - dummy sync flag']
  %s0 = inlined_call_operand.hbm [shape: s32[128], index: 0, kind: input, shape index: {}]
  %s1 = inlined_call_operand.vmem [shape: s32[128], index: 1, kind: input, shape index: {}]
  %s2 = inlined_call_operand.vmem [shape: f32[1,128], index: 2, kind: input, shape index: {}]
  %s3 = inlined_call_operand.hbm [shape: f32[16,32], index: 3, kind: input, shape index: {}]
  %s4 = inlined_call_operand.hbm [shape: f32[24,32], index: 4, kind: input, shape index: {}]
  %s5 = inlined_call_operand.hbm [shape: f32[1,128], index: 5, kind: output, shape index: {}]
  %s6 = sld [smem:[#allocation0]]
  $region36: #{tpu_custom_call.1} parent=0
    _
  %s8 = ssub.s32 1, %s6
  %s9 = scalar_select 0, %s8, %s6
  %11 = dma.hbm_to_smem %s0, 16, [#allocation6], [#allocation5]
  %s12 = sshll.u32 %s1, 4
  %s13 = int_to_ptr.vmem [resolvable:$true] %s12
  %15 = dma.vmem_to_smem %s13, 16, [#allocation7], [#allocation5]
  %16 = dma.done [#allocation5], 32
  %17 = sfence
  $region1: #{tpu_custom_call.1} parent=0
    #allocation8 [shape = 'u8[512]{0}', space=vmem, size = 0x400, scoped, tag = 'output window, operand 0, single buffered']
    #allocation9 [shape = 's32[1]{0}', space=sflag, size = 0x4, scoped, tag = 'scoped memory for tpu_custom_call.1']
    %18 = vsyncpa [#allocation9], 0
    // Predicated region
    $region2: #{tpu_custom_call.1} parent=1 // pred_check
      _
    $region3: #{tpu_custom_call.1} parent=1 // pred_check_branch
      %20 = sbr.rel (0) target = $region5
    $region4: #{tpu_custom_call.1} parent=1 // pred_region
      _
    $region5: #{tpu_custom_call.1} parent=1 // pred_fallthru
      _
    %s21 = smul.u32 0, 128
    loop: start=0, step=1, limit=128
    $region6: #{tpu_custom_call.1} parent=1 // loop_pre_header
      _
    $region7: #{tpu_custom_call.1} parent=1 // loop_header
      %s23 = sphi 0, %s27
      %p24 = scmp.ge.s32.totalorder %s23, 128
    $region8: #{tpu_custom_call.1} parent=1 // loop_header_branch
      %26 = sbr.rel (%p24) target = $region12
    $region9: #{tpu_custom_call.1} parent=1 // loop_body
      %s28 = sadd.s32 %s21, %s23
      %s29 = sld [smem:[#allocation6 + %s28]]
      %s30 = sld [smem:[#allocation7 + %s28]]
      %s31 = smul.addr %s29, 16
      %s32 = scalar_lea.hbm %s3, %s31
      %s33 = scalar_lea.vmem [#allocation2], %s23
      // Predicated region
      $region13: #{tpu_custom_call.1} parent=9 // pred_check
        _
      $region14: #{tpu_custom_call.1} parent=9 // pred_check_branch
        %35 = sbr.rel target = $region16
      $region15: #{tpu_custom_call.1} parent=9 // pred_region
        %36 = sst [smem:[#allocation12]] [#allocation11]
        %37 = sst [smem:[#allocation13]] [#allocation10]
      $region16: #{tpu_custom_call.1} parent=9 // pred_fallthru
        _
      %39 = shalt.err (0)
      %s41 = sshll.u32 %s33, 4
      %s42 = int_to_ptr.vmem [resolvable:$true] %s41
      %44 = dma.hbm_to_vmem [thread:$0]  %s32, 16, %s42, [#allocation4]
      %s45 = smul.addr %s30, 16
      %s46 = scalar_lea.hbm %s4, %s45
      %s47 = scalar_lea.vmem [#allocation3], %s23
      %s48 = scalar_lea.sflag [#allocation4], 1
      // Predicated region
      $region17: #{tpu_custom_call.1} parent=9 // pred_check
        _
      $region18: #{tpu_custom_call.1} parent=9 // pred_check_branch
        %50 = sbr.rel target = $region20
      $region19: #{tpu_custom_call.1} parent=9 // pred_region
        %51 = sst [smem:[#allocation12]] [#allocation15]
        %52 = sst [smem:[#allocation13]] [#allocation14]
      $region20: #{tpu_custom_call.1} parent=9 // pred_fallthru
        _
      %54 = shalt.err (0)
      %s56 = sshll.u32 %s47, 4
      %s57 = int_to_ptr.vmem [resolvable:$true] %s56
      %59 = dma.hbm_to_vmem [thread:$0]  %s46, 16, %s57, %s48
    $region10: #{tpu_custom_call.1} parent=1 // loop_footer
      %s27 = sadd.s32 1, %s23
    $region11: #{tpu_custom_call.1} parent=1 // loop_footer_branch
      %22 = sbr.rel target = $region7
    $region12: #{tpu_custom_call.1} parent=1 // loop_exit
      _
    loop: start=0, step=1, limit=128
    $region21: #{tpu_custom_call.1} parent=1 // loop_pre_header
      _
    $region22: #{tpu_custom_call.1} parent=1 // loop_header
      %s61 = sphi 0, %s65
      %p62 = scmp.ge.s32.totalorder %s61, 128
    $region23: #{tpu_custom_call.1} parent=1 // loop_header_branch
      %64 = sbr.rel (%p62) target = $region27
    $region24: #{tpu_custom_call.1} parent=1 // loop_body
      %67 = dma.done [#allocation4], 16
      %s68 = scalar_lea.sflag [#allocation4], 1
      %70 = dma.done %s68, 16
    $region25: #{tpu_custom_call.1} parent=1 // loop_footer
      %s65 = sadd.s32 1, %s61
    $region26: #{tpu_custom_call.1} parent=1 // loop_footer_branch
      %60 = sbr.rel target = $region22
    $region27: #{tpu_custom_call.1} parent=1 // loop_exit
      _
    %v71 = vld [vmem:[#allocation2] sm:$0xff]
    %v72 = vld [vmem:[#allocation2 + $0x8] sm:$0xff]
    %v73 = vld [vmem:[#allocation2 + $0x10] sm:$0xff]
    %v74 = vld [vmem:[#allocation2 + $0x18] sm:$0xff]
    %v75 = vld [vmem:[#allocation2 + $0x20] sm:$0xff]
    %v76 = vld [vmem:[#allocation2 + $0x28] sm:$0xff]
    %v77 = vld [vmem:[#allocation2 + $0x30] sm:$0xff]
    %v78 = vld [vmem:[#allocation2 + $0x38] sm:$0xff]
    %v79 = vld [vmem:[#allocation2 + $0x40] sm:$0xff]
    %v80 = vld [vmem:[#allocation2 + $0x48] sm:$0xff]
    %v81 = vld [vmem:[#allocation2 + $0x50] sm:$0xff]
    %v82 = vld [vmem:[#allocation2 + $0x58] sm:$0xff]
    %v83 = vld [vmem:[#allocation2 + $0x60] sm:$0xff]
    %v84 = vld [vmem:[#allocation2 + $0x68] sm:$0xff]
    %v85 = vld [vmem:[#allocation2 + $0x70] sm:$0xff]
    %v86 = vld [vmem:[#allocation2 + $0x78] sm:$0xff]
    %v87 = vld [vmem:[#allocation3] sm:$0xff]
    %v88 = vld [vmem:[#allocation3 + $0x8] sm:$0xff]
    %v89 = vld [vmem:[#allocation3 + $0x10] sm:$0xff]
    %v90 = vld [vmem:[#allocation3 + $0x18] sm:$0xff]
    %v91 = vld [vmem:[#allocation3 + $0x20] sm:$0xff]
    %v92 = vld [vmem:[#allocation3 + $0x28] sm:$0xff]
    %v93 = vld [vmem:[#allocation3 + $0x30] sm:$0xff]
    %v94 = vld [vmem:[#allocation3 + $0x38] sm:$0xff]
    %v95 = vld [vmem:[#allocation3 + $0x40] sm:$0xff]
    %v96 = vld [vmem:[#allocation3 + $0x48] sm:$0xff]
    %v97 = vld [vmem:[#allocation3 + $0x50] sm:$0xff]
    %v98 = vld [vmem:[#allocation3 + $0x58] sm:$0xff]
    %v99 = vld [vmem:[#allocation3 + $0x60] sm:$0xff]
    %v100 = vld [vmem:[#allocation3 + $0x68] sm:$0xff]
    %v101 = vld [vmem:[#allocation3 + $0x70] sm:$0xff]
    %v102 = vld [vmem:[#allocation3 + $0x78] sm:$0xff]
    %v103 = vmul.f32 %v71, %v87
    %v104 = vmul.f32 %v72, %v88
    %v105 = vmul.f32 %v73, %v89
    %v106 = vmul.f32 %v74, %v90
    %v107 = vmul.f32 %v75, %v91
    %v108 = vmul.f32 %v76, %v92
    %v109 = vmul.f32 %v77, %v93
    %v110 = vmul.f32 %v78, %v94
    %v111 = vmul.f32 %v79, %v95
    %v112 = vmul.f32 %v80, %v96
    %v113 = vmul.f32 %v81, %v97
    %v114 = vmul.f32 %v82, %v98
    %v115 = vmul.f32 %v83, %v99
    %v116 = vmul.f32 %v84, %v100
    %v117 = vmul.f32 %v85, %v101
    %v118 = vmul.f32 %v86, %v102
    %vm119 = vcmask 261120
    %v120 = vsel %vm119, %v103, 0.0
    %121 = vadd.xlane.f32.xlu0 %v120
    %v122 = vpop.xlane.xlu0 %121
    %v123 = vsel %vm119, %v104, 0.0
    %124 = vadd.xlane.f32.xlu0 %v123
    %v125 = vpop.xlane.xlu0 %124
    %v126 = vsel %vm119, %v105, 0.0
    %127 = vadd.xlane.f32.xlu0 %v126
    %v128 = vpop.xlane.xlu0 %127
    %v129 = vsel %vm119, %v106, 0.0
    %130 = vadd.xlane.f32.xlu0 %v129
    %v131 = vpop.xlane.xlu0 %130
    %v132 = vsel %vm119, %v107, 0.0
    %133 = vadd.xlane.f32.xlu0 %v132
    %v134 = vpop.xlane.xlu0 %133
    %v135 = vsel %vm119, %v108, 0.0
    %136 = vadd.xlane.f32.xlu0 %v135
    %v137 = vpop.xlane.xlu0 %136
    %v138 = vsel %vm119, %v109, 0.0
    %139 = vadd.xlane.f32.xlu0 %v138
    %v140 = vpop.xlane.xlu0 %139
    %v141 = vsel %vm119, %v110, 0.0
    %142 = vadd.xlane.f32.xlu0 %v141
    %v143 = vpop.xlane.xlu0 %142
    %v144 = vsel %vm119, %v111, 0.0
    %145 = vadd.xlane.f32.xlu0 %v144
    %v146 = vpop.xlane.xlu0 %145
    %v147 = vsel %vm119, %v112, 0.0
    %148 = vadd.xlane.f32.xlu0 %v147
    %v149 = vpop.xlane.xlu0 %148
    %v150 = vsel %vm119, %v113, 0.0
    %151 = vadd.xlane.f32.xlu0 %v150
    %v152 = vpop.xlane.xlu0 %151
    %v153 = vsel %vm119, %v114, 0.0
    %154 = vadd.xlane.f32.xlu0 %v153
    %v155 = vpop.xlane.xlu0 %154
    %v156 = vsel %vm119, %v115, 0.0
    %157 = vadd.xlane.f32.xlu0 %v156
    %v158 = vpop.xlane.xlu0 %157
    %v159 = vsel %vm119, %v116, 0.0
    %160 = vadd.xlane.f32.xlu0 %v159
    %v161 = vpop.xlane.xlu0 %160
    %v162 = vsel %vm119, %v117, 0.0
    %163 = vadd.xlane.f32.xlu0 %v162
    %v164 = vpop.xlane.xlu0 %163
    %v165 = vsel %vm119, %v118, 0.0
    %166 = vadd.xlane.f32.xlu0 %v165
    %v167 = vpop.xlane.xlu0 %166
    %v168 = vld [vmem:[%s2] sm:$0x1]
    %v185 = vlaneseq
    %v186 = vshrl.u32 %v185, 7
    %v187 = vsub.s32 0, %v186
    %v188 = vrot.slane %v122, %v187
    %v189 = vlaneseq
    %v190 = vshrl.u32 %v189, 7
    %v191 = vsub.s32 1, %v190
    %v192 = vrot.slane %v122, %v191
    %v193 = vlaneseq
    %v194 = vshrl.u32 %v193, 7
    %v195 = vsub.s32 2, %v194
    %v196 = vrot.slane %v122, %v195
    %v197 = vlaneseq
    %v198 = vshrl.u32 %v197, 7
    %v199 = vsub.s32 3, %v198
    %v200 = vrot.slane %v122, %v199
    %v201 = vlaneseq
    %v202 = vshrl.u32 %v201, 7
    %v203 = vsub.s32 4, %v202
    %v204 = vrot.slane %v122, %v203
    %v205 = vlaneseq
    %v206 = vshrl.u32 %v205, 7
    %v207 = vsub.s32 5, %v206
    %v208 = vrot.slane %v122, %v207
    %v209 = vlaneseq
    %v210 = vshrl.u32 %v209, 7
    %v211 = vsub.s32 6, %v210
    %v212 = vrot.slane %v122, %v211
    %v213 = vlaneseq
    %v214 = vshrl.u32 %v213, 7
    %v215 = vsub.s32 7, %v214
    %v216 = vrot.slane %v122, %v215
    %v217 = vlaneseq
    %v218 = vshrl.u32 %v217, 7
    %v219 = vsub.s32 0, %v218
    %v220 = vrot.slane %v125, %v219
    %v221 = vlaneseq
    %v222 = vshrl.u32 %v221, 7
    %v223 = vsub.s32 1, %v222
    %v224 = vrot.slane %v125, %v223
    %v225 = vlaneseq
    %v226 = vshrl.u32 %v225, 7
    %v227 = vsub.s32 2, %v226
    %v228 = vrot.slane %v125, %v227
    %v229 = vlaneseq
    %v230 = vshrl.u32 %v229, 7
    %v231 = vsub.s32 3, %v230
    %v232 = vrot.slane %v125, %v231
    %v233 = vlaneseq
    %v234 = vshrl.u32 %v233, 7
    %v235 = vsub.s32 4, %v234
    %v236 = vrot.slane %v125, %v235
    %v237 = vlaneseq
    %v238 = vshrl.u32 %v237, 7
    %v239 = vsub.s32 5, %v238
    %v240 = vrot.slane %v125, %v239
    %v241 = vlaneseq
    %v242 = vshrl.u32 %v241, 7
    %v243 = vsub.s32 6, %v242
    %v244 = vrot.slane %v125, %v243
    %v245 = vlaneseq
    %v246 = vshrl.u32 %v245, 7
    %v247 = vsub.s32 7, %v246
    %v248 = vrot.slane %v125, %v247
    %v249 = vlaneseq
    %v250 = vshrl.u32 %v249, 7
    %v251 = vsub.s32 0, %v250
    %v252 = vrot.slane %v128, %v251
    %v253 = vlaneseq
    %v254 = vshrl.u32 %v253, 7
    %v255 = vsub.s32 1, %v254
    %v256 = vrot.slane %v128, %v255
    %v257 = vlaneseq
    %v258 = vshrl.u32 %v257, 7
    %v259 = vsub.s32 2, %v258
    %v260 = vrot.slane %v128, %v259
    %v261 = vlaneseq
    %v262 = vshrl.u32 %v261, 7
    %v263 = vsub.s32 3, %v262
    %v264 = vrot.slane %v128, %v263
    %v265 = vlaneseq
    %v266 = vshrl.u32 %v265, 7
    %v267 = vsub.s32 4, %v266
    %v268 = vrot.slane %v128, %v267
    %v269 = vlaneseq
    %v270 = vshrl.u32 %v269, 7
    %v271 = vsub.s32 5, %v270
    %v272 = vrot.slane %v128, %v271
    %v273 = vlaneseq
    %v274 = vshrl.u32 %v273, 7
    %v275 = vsub.s32 6, %v274
    %v276 = vrot.slane %v128, %v275
    %v277 = vlaneseq
    %v278 = vshrl.u32 %v277, 7
    %v279 = vsub.s32 7, %v278
    %v280 = vrot.slane %v128, %v279
    %v281 = vlaneseq
    %v282 = vshrl.u32 %v281, 7
    %v283 = vsub.s32 0, %v282
    %v284 = vrot.slane %v131, %v283
    %v285 = vlaneseq
    %v286 = vshrl.u32 %v285, 7
    %v287 = vsub.s32 1, %v286
    %v288 = vrot.slane %v131, %v287
    %v289 = vlaneseq
    %v290 = vshrl.u32 %v289, 7
    %v291 = vsub.s32 2, %v290
    %v292 = vrot.slane %v131, %v291
    %v293 = vlaneseq
    %v294 = vshrl.u32 %v293, 7
    %v295 = vsub.s32 3, %v294
    %v296 = vrot.slane %v131, %v295
    %v297 = vlaneseq
    %v298 = vshrl.u32 %v297, 7
    %v299 = vsub.s32 4, %v298
    %v300 = vrot.slane %v131, %v299
    %v301 = vlaneseq
    %v302 = vshrl.u32 %v301, 7
    %v303 = vsub.s32 5, %v302
    %v304 = vrot.slane %v131, %v303
    %v305 = vlaneseq
    %v306 = vshrl.u32 %v305, 7
    %v307 = vsub.s32 6, %v306
    %v308 = vrot.slane %v131, %v307
    %v309 = vlaneseq
    %v310 = vshrl.u32 %v309, 7
    %v311 = vsub.s32 7, %v310
    %v312 = vrot.slane %v131, %v311
    %v313 = vlaneseq
    %v314 = vshrl.u32 %v313, 7
    %v315 = vsub.s32 0, %v314
    %v316 = vrot.slane %v134, %v315
    %v317 = vlaneseq
    %v318 = vshrl.u32 %v317, 7
    %v319 = vsub.s32 1, %v318
    %v320 = vrot.slane %v134, %v319
    %v321 = vlaneseq
    %v322 = vshrl.u32 %v321, 7
    %v323 = vsub.s32 2, %v322
    %v324 = vrot.slane %v134, %v323
    %v325 = vlaneseq
    %v326 = vshrl.u32 %v325, 7
    %v327 = vsub.s32 3, %v326
    %v328 = vrot.slane %v134, %v327
    %v329 = vlaneseq
    %v330 = vshrl.u32 %v329, 7
    %v331 = vsub.s32 4, %v330
    %v332 = vrot.slane %v134, %v331
    %v333 = vlaneseq
    %v334 = vshrl.u32 %v333, 7
    %v335 = vsub.s32 5, %v334
    %v336 = vrot.slane %v134, %v335
    %v337 = vlaneseq
    %v338 = vshrl.u32 %v337, 7
    %v339 = vsub.s32 6, %v338
    %v340 = vrot.slane %v134, %v339
    %v341 = vlaneseq
    %v342 = vshrl.u32 %v341, 7
    %v343 = vsub.s32 7, %v342
    %v344 = vrot.slane %v134, %v343
    %v345 = vlaneseq
    %v346 = vshrl.u32 %v345, 7
    %v347 = vsub.s32 0, %v346
    %v348 = vrot.slane %v137, %v347
    %v349 = vlaneseq
    %v350 = vshrl.u32 %v349, 7
    %v351 = vsub.s32 1, %v350
    %v352 = vrot.slane %v137, %v351
    %v353 = vlaneseq
    %v354 = vshrl.u32 %v353, 7
    %v355 = vsub.s32 2, %v354
    %v356 = vrot.slane %v137, %v355
    %v357 = vlaneseq
    %v358 = vshrl.u32 %v357, 7
    %v359 = vsub.s32 3, %v358
    %v360 = vrot.slane %v137, %v359
    %v361 = vlaneseq
    %v362 = vshrl.u32 %v361, 7
    %v363 = vsub.s32 4, %v362
    %v364 = vrot.slane %v137, %v363
    %v365 = vlaneseq
    %v366 = vshrl.u32 %v365, 7
    %v367 = vsub.s32 5, %v366
    %v368 = vrot.slane %v137, %v367
    %v369 = vlaneseq
    %v370 = vshrl.u32 %v369, 7
    %v371 = vsub.s32 6, %v370
    %v372 = vrot.slane %v137, %v371
    %v373 = vlaneseq
    %v374 = vshrl.u32 %v373, 7
    %v375 = vsub.s32 7, %v374
    %v376 = vrot.slane %v137, %v375
    %v377 = vlaneseq
    %v378 = vshrl.u32 %v377, 7
    %v379 = vsub.s32 0, %v378
    %v380 = vrot.slane %v140, %v379
    %v381 = vlaneseq
    %v382 = vshrl.u32 %v381, 7
    %v383 = vsub.s32 1, %v382
    %v384 = vrot.slane %v140, %v383
    %v385 = vlaneseq
    %v386 = vshrl.u32 %v385, 7
    %v387 = vsub.s32 2, %v386
    %v388 = vrot.slane %v140, %v387
    %v389 = vlaneseq
    %v390 = vshrl.u32 %v389, 7
    %v391 = vsub.s32 3, %v390
    %v392 = vrot.slane %v140, %v391
    %v393 = vlaneseq
    %v394 = vshrl.u32 %v393, 7
    %v395 = vsub.s32 4, %v394
    %v396 = vrot.slane %v140, %v395
    %v397 = vlaneseq
    %v398 = vshrl.u32 %v397, 7
    %v399 = vsub.s32 5, %v398
    %v400 = vrot.slane %v140, %v399
    %v401 = vlaneseq
    %v402 = vshrl.u32 %v401, 7
    %v403 = vsub.s32 6, %v402
    %v404 = vrot.slane %v140, %v403
    %v405 = vlaneseq
    %v406 = vshrl.u32 %v405, 7
    %v407 = vsub.s32 7, %v406
    %v408 = vrot.slane %v140, %v407
    %v409 = vlaneseq
    %v410 = vshrl.u32 %v409, 7
    %v411 = vsub.s32 0, %v410
    %v412 = vrot.slane %v143, %v411
    %v413 = vlaneseq
    %v414 = vshrl.u32 %v413, 7
    %v415 = vsub.s32 1, %v414
    %v416 = vrot.slane %v143, %v415
    %v417 = vlaneseq
    %v418 = vshrl.u32 %v417, 7
    %v419 = vsub.s32 2, %v418
    %v420 = vrot.slane %v143, %v419
    %v421 = vlaneseq
    %v422 = vshrl.u32 %v421, 7
    %v423 = vsub.s32 3, %v422
    %v424 = vrot.slane %v143, %v423
    %v425 = vlaneseq
    %v426 = vshrl.u32 %v425, 7
    %v427 = vsub.s32 4, %v426
    %v428 = vrot.slane %v143, %v427
    %v429 = vlaneseq
    %v430 = vshrl.u32 %v429, 7
    %v431 = vsub.s32 5, %v430
    %v432 = vrot.slane %v143, %v431
    %v433 = vlaneseq
    %v434 = vshrl.u32 %v433, 7
    %v435 = vsub.s32 6, %v434
    %v436 = vrot.slane %v143, %v435
    %v437 = vlaneseq
    %v438 = vshrl.u32 %v437, 7
    %v439 = vsub.s32 7, %v438
    %v440 = vrot.slane %v143, %v439
    %v441 = vlaneseq
    %v442 = vshrl.u32 %v441, 7
    %v443 = vsub.s32 0, %v442
    %v444 = vrot.slane %v146, %v443
    %v445 = vlaneseq
    %v446 = vshrl.u32 %v445, 7
    %v447 = vsub.s32 1, %v446
    %v448 = vrot.slane %v146, %v447
    %v449 = vlaneseq
    %v450 = vshrl.u32 %v449, 7
    %v451 = vsub.s32 2, %v450
    %v452 = vrot.slane %v146, %v451
    %v453 = vlaneseq
    %v454 = vshrl.u32 %v453, 7
    %v455 = vsub.s32 3, %v454
    %v456 = vrot.slane %v146, %v455
    %v457 = vlaneseq
    %v458 = vshrl.u32 %v457, 7
    %v459 = vsub.s32 4, %v458
    %v460 = vrot.slane %v146, %v459
    %v461 = vlaneseq
    %v462 = vshrl.u32 %v461, 7
    %v463 = vsub.s32 5, %v462
    %v464 = vrot.slane %v146, %v463
    %v465 = vlaneseq
    %v466 = vshrl.u32 %v465, 7
    %v467 = vsub.s32 6, %v466
    %v468 = vrot.slane %v146, %v467
    %v469 = vlaneseq
    %v470 = vshrl.u32 %v469, 7
    %v471 = vsub.s32 7, %v470
    %v472 = vrot.slane %v146, %v471
    %v473 = vlaneseq
    %v474 = vshrl.u32 %v473, 7
    %v475 = vsub.s32 0, %v474
    %v476 = vrot.slane %v149, %v475
    %v477 = vlaneseq
    %v478 = vshrl.u32 %v477, 7
    %v479 = vsub.s32 1, %v478
    %v480 = vrot.slane %v149, %v479
    %v481 = vlaneseq
    %v482 = vshrl.u32 %v481, 7
    %v483 = vsub.s32 2, %v482
    %v484 = vrot.slane %v149, %v483
    %v485 = vlaneseq
    %v486 = vshrl.u32 %v485, 7
    %v487 = vsub.s32 3, %v486
    %v488 = vrot.slane %v149, %v487
    %v489 = vlaneseq
    %v490 = vshrl.u32 %v489, 7
    %v491 = vsub.s32 4, %v490
    %v492 = vrot.slane %v149, %v491
    %v493 = vlaneseq
    %v494 = vshrl.u32 %v493, 7
    %v495 = vsub.s32 5, %v494
    %v496 = vrot.slane %v149, %v495
    %v497 = vlaneseq
    %v498 = vshrl.u32 %v497, 7
    %v499 = vsub.s32 6, %v498
    %v500 = vrot.slane %v149, %v499
    %v501 = vlaneseq
    %v502 = vshrl.u32 %v501, 7
    %v503 = vsub.s32 7, %v502
    %v504 = vrot.slane %v149, %v503
    %v505 = vlaneseq
    %v506 = vshrl.u32 %v505, 7
    %v507 = vsub.s32 0, %v506
    %v508 = vrot.slane %v152, %v507
    %v509 = vlaneseq
    %v510 = vshrl.u32 %v509, 7
    %v511 = vsub.s32 1, %v510
    %v512 = vrot.slane %v152, %v511
    %v513 = vlaneseq
    %v514 = vshrl.u32 %v513, 7
    %v515 = vsub.s32 2, %v514
    %v516 = vrot.slane %v152, %v515
    %v517 = vlaneseq
    %v518 = vshrl.u32 %v517, 7
    %v519 = vsub.s32 3, %v518
    %v520 = vrot.slane %v152, %v519
    %v521 = vlaneseq
    %v522 = vshrl.u32 %v521, 7
    %v523 = vsub.s32 4, %v522
    %v524 = vrot.slane %v152, %v523
    %v525 = vlaneseq
    %v526 = vshrl.u32 %v525, 7
    %v527 = vsub.s32 5, %v526
    %v528 = vrot.slane %v152, %v527
    %v529 = vlaneseq
    %v530 = vshrl.u32 %v529, 7
    %v531 = vsub.s32 6, %v530
    %v532 = vrot.slane %v152, %v531
    %v533 = vlaneseq
    %v534 = vshrl.u32 %v533, 7
    %v535 = vsub.s32 7, %v534
    %v536 = vrot.slane %v152, %v535
    %v537 = vlaneseq
    %v538 = vshrl.u32 %v537, 7
    %v539 = vsub.s32 0, %v538
    %v540 = vrot.slane %v155, %v539
    %v541 = vlaneseq
    %v542 = vshrl.u32 %v541, 7
    %v543 = vsub.s32 1, %v542
    %v544 = vrot.slane %v155, %v543
    %v545 = vlaneseq
    %v546 = vshrl.u32 %v545, 7
    %v547 = vsub.s32 2, %v546
    %v548 = vrot.slane %v155, %v547
    %v549 = vlaneseq
    %v550 = vshrl.u32 %v549, 7
    %v551 = vsub.s32 3, %v550
    %v552 = vrot.slane %v155, %v551
    %v553 = vlaneseq
    %v554 = vshrl.u32 %v553, 7
    %v555 = vsub.s32 4, %v554
    %v556 = vrot.slane %v155, %v555
    %v557 = vlaneseq
    %v558 = vshrl.u32 %v557, 7
    %v559 = vsub.s32 5, %v558
    %v560 = vrot.slane %v155, %v559
    %v561 = vlaneseq
    %v562 = vshrl.u32 %v561, 7
    %v563 = vsub.s32 6, %v562
    %v564 = vrot.slane %v155, %v563
    %v565 = vlaneseq
    %v566 = vshrl.u32 %v565, 7
    %v567 = vsub.s32 7, %v566
    %v568 = vrot.slane %v155, %v567
    %v569 = vlaneseq
    %v570 = vshrl.u32 %v569, 7
    %v571 = vsub.s32 0, %v570
    %v572 = vrot.slane %v158, %v571
    %v573 = vlaneseq
    %v574 = vshrl.u32 %v573, 7
    %v575 = vsub.s32 1, %v574
    %v576 = vrot.slane %v158, %v575
    %v577 = vlaneseq
    %v578 = vshrl.u32 %v577, 7
    %v579 = vsub.s32 2, %v578
    %v580 = vrot.slane %v158, %v579
    %v581 = vlaneseq
    %v582 = vshrl.u32 %v581, 7
    %v583 = vsub.s32 3, %v582
    %v584 = vrot.slane %v158, %v583
    %v585 = vlaneseq
    %v586 = vshrl.u32 %v585, 7
    %v587 = vsub.s32 4, %v586
    %v588 = vrot.slane %v158, %v587
    %v589 = vlaneseq
    %v590 = vshrl.u32 %v589, 7
    %v591 = vsub.s32 5, %v590
    %v592 = vrot.slane %v158, %v591
    %v593 = vlaneseq
    %v594 = vshrl.u32 %v593, 7
    %v595 = vsub.s32 6, %v594
    %v596 = vrot.slane %v158, %v595
    %v597 = vlaneseq
    %v598 = vshrl.u32 %v597, 7
    %v599 = vsub.s32 7, %v598
    %v600 = vrot.slane %v158, %v599
    %v601 = vlaneseq
    %v602 = vshrl.u32 %v601, 7
    %v603 = vsub.s32 0, %v602
    %v604 = vrot.slane %v161, %v603
    %v605 = vlaneseq
    %v606 = vshrl.u32 %v605, 7
    %v607 = vsub.s32 1, %v606
    %v608 = vrot.slane %v161, %v607
    %v609 = vlaneseq
    %v610 = vshrl.u32 %v609, 7
    %v611 = vsub.s32 2, %v610
    %v612 = vrot.slane %v161, %v611
    %v613 = vlaneseq
    %v614 = vshrl.u32 %v613, 7
    %v615 = vsub.s32 3, %v614
    %v616 = vrot.slane %v161, %v615
    %v617 = vlaneseq
    %v618 = vshrl.u32 %v617, 7
    %v619 = vsub.s32 4, %v618
    %v620 = vrot.slane %v161, %v619
    %v621 = vlaneseq
    %v622 = vshrl.u32 %v621, 7
    %v623 = vsub.s32 5, %v622
    %v624 = vrot.slane %v161, %v623
    %v625 = vlaneseq
    %v626 = vshrl.u32 %v625, 7
    %v627 = vsub.s32 6, %v626
    %v628 = vrot.slane %v161, %v627
    %v629 = vlaneseq
    %v630 = vshrl.u32 %v629, 7
    %v631 = vsub.s32 7, %v630
    %v632 = vrot.slane %v161, %v631
    %v633 = vlaneseq
    %v634 = vshrl.u32 %v633, 7
    %v635 = vsub.s32 0, %v634
    %v636 = vrot.slane %v164, %v635
    %v637 = vlaneseq
    %v638 = vshrl.u32 %v637, 7
    %v639 = vsub.s32 1, %v638
    %v640 = vrot.slane %v164, %v639
    %v641 = vlaneseq
    %v642 = vshrl.u32 %v641, 7
    %v643 = vsub.s32 2, %v642
    %v644 = vrot.slane %v164, %v643
    %v645 = vlaneseq
    %v646 = vshrl.u32 %v645, 7
    %v647 = vsub.s32 3, %v646
    %v648 = vrot.slane %v164, %v647
    %v649 = vlaneseq
    %v650 = vshrl.u32 %v649, 7
    %v651 = vsub.s32 4, %v650
    %v652 = vrot.slane %v164, %v651
    %v653 = vlaneseq
    %v654 = vshrl.u32 %v653, 7
    %v655 = vsub.s32 5, %v654
    %v656 = vrot.slane %v164, %v655
    %v657 = vlaneseq
    %v658 = vshrl.u32 %v657, 7
    %v659 = vsub.s32 6, %v658
    %v660 = vrot.slane %v164, %v659
    %v661 = vlaneseq
    %v662 = vshrl.u32 %v661, 7
    %v663 = vsub.s32 7, %v662
    %v664 = vrot.slane %v164, %v663
    %v665 = vlaneseq
    %v666 = vshrl.u32 %v665, 7
    %v667 = vsub.s32 0, %v666
    %v668 = vrot.slane %v167, %v667
    %v669 = vlaneseq
    %v670 = vshrl.u32 %v669, 7
    %v671 = vsub.s32 1, %v670
    %v672 = vrot.slane %v167, %v671
    %v673 = vlaneseq
    %v674 = vshrl.u32 %v673, 7
    %v675 = vsub.s32 2, %v674
    %v676 = vrot.slane %v167, %v675
    %v677 = vlaneseq
    %v678 = vshrl.u32 %v677, 7
    %v679 = vsub.s32 3, %v678
    %v680 = vrot.slane %v167, %v679
    %v681 = vlaneseq
    %v682 = vshrl.u32 %v681, 7
    %v683 = vsub.s32 4, %v682
    %v684 = vrot.slane %v167, %v683
    %v685 = vlaneseq
    %v686 = vshrl.u32 %v685, 7
    %v687 = vsub.s32 5, %v686
    %v688 = vrot.slane %v167, %v687
    %v689 = vlaneseq
    %v690 = vshrl.u32 %v689, 7
    %v691 = vsub.s32 6, %v690
    %v692 = vrot.slane %v167, %v691
    %v693 = vlaneseq
    %v694 = vshrl.u32 %v693, 7
    %v695 = vsub.s32 7, %v694
    %v696 = vrot.slane %v167, %v695
    %v697 = vcombine.low %v188, %v192
    %v698 = vcombine.low %v196, %v200
    %v699 = vcombine.low %v204, %v208
    %v700 = vcombine.low %v212, %v216
    %v702 = vunpack.c.l.s4 1966171168
    %v703 = vunpack.c.0.s8 %v702
    %v704 = vlaneseq
    %v705 = vshrl.u32 %v704, 7
    %v706 = vsub.s32 %v703, %v705
    %v707 = vrot.slane %v697, %v706
    %v709 = vunpack.c.l.s4 1966171168
    %v710 = vunpack.c.0.s8 %v709
    %v711 = vlaneseq
    %v712 = vshrl.u32 %v711, 7
    %v713 = vsub.s32 %v710, %v712
    %v714 = vrot.slane %v698, %v713
    %v716 = vunpack.c.l.s4 1966171168
    %v717 = vunpack.c.0.s8 %v716
    %v718 = vlaneseq
    %v719 = vshrl.u32 %v718, 7
    %v720 = vsub.s32 %v717, %v719
    %v721 = vrot.slane %v699, %v720
    %v723 = vunpack.c.l.s4 1966171168
    %v724 = vunpack.c.0.s8 %v723
    %v725 = vlaneseq
    %v726 = vshrl.u32 %v725, 7
    %v727 = vsub.s32 %v724, %v726
    %v728 = vrot.slane %v700, %v727
    %v729 = vcombine.low %v707, %v714
    %v730 = vcombine.low %v721, %v728
    %v732 = vunpack.c.l.s4 1966171168
    %v733 = vunpack.c.0.s8 %v732
    %v734 = vlaneseq
    %v735 = vshrl.u32 %v734, 7
    %v736 = vsub.s32 %v733, %v735
    %v737 = vrot.slane %v729, %v736
    %v739 = vunpack.c.l.s4 1966171168
    %v740 = vunpack.c.0.s8 %v739
    %v741 = vlaneseq
    %v742 = vshrl.u32 %v741, 7
    %v743 = vsub.s32 %v740, %v742
    %v744 = vrot.slane %v730, %v743
    %v745 = vcombine.low %v737, %v744
    %v746 = vcombine.low %v220, %v224
    %v747 = vcombine.low %v228, %v232
    %v748 = vcombine.low %v236, %v240
    %v749 = vcombine.low %v244, %v248
    %v751 = vunpack.c.l.s4 1966171168
    %v752 = vunpack.c.0.s8 %v751
    %v753 = vlaneseq
    %v754 = vshrl.u32 %v753, 7
    %v755 = vsub.s32 %v752, %v754
    %v756 = vrot.slane %v746, %v755
    %v758 = vunpack.c.l.s4 1966171168
    %v759 = vunpack.c.0.s8 %v758
    %v760 = vlaneseq
    %v761 = vshrl.u32 %v760, 7
    %v762 = vsub.s32 %v759, %v761
    %v763 = vrot.slane %v747, %v762
    %v765 = vunpack.c.l.s4 1966171168
    %v766 = vunpack.c.0.s8 %v765
    %v767 = vlaneseq
    %v768 = vshrl.u32 %v767, 7
    %v769 = vsub.s32 %v766, %v768
    %v770 = vrot.slane %v748, %v769
    %v772 = vunpack.c.l.s4 1966171168
    %v773 = vunpack.c.0.s8 %v772
    %v774 = vlaneseq
    %v775 = vshrl.u32 %v774, 7
    %v776 = vsub.s32 %v773, %v775
    %v777 = vrot.slane %v749, %v776
    %v778 = vcombine.low %v756, %v763
    %v779 = vcombine.low %v770, %v777
    %v781 = vunpack.c.l.s4 1966171168
    %v782 = vunpack.c.0.s8 %v781
    %v783 = vlaneseq
    %v784 = vshrl.u32 %v783, 7
    %v785 = vsub.s32 %v782, %v784
    %v786 = vrot.slane %v778, %v785
    %v788 = vunpack.c.l.s4 1966171168
    %v789 = vunpack.c.0.s8 %v788
    %v790 = vlaneseq
    %v791 = vshrl.u32 %v790, 7
    %v792 = vsub.s32 %v789, %v791
    %v793 = vrot.slane %v779, %v792
    %v794 = vcombine.low %v786, %v793
    %v795 = vcombine.low %v252, %v256
    %v796 = vcombine.low %v260, %v264
    %v797 = vcombine.low %v268, %v272
    %v798 = vcombine.low %v276, %v280
    %v800 = vunpack.c.l.s4 1966171168
    %v801 = vunpack.c.0.s8 %v800
    %v802 = vlaneseq
    %v803 = vshrl.u32 %v802, 7
    %v804 = vsub.s32 %v801, %v803
    %v805 = vrot.slane %v795, %v804
    %v807 = vunpack.c.l.s4 1966171168
    %v808 = vunpack.c.0.s8 %v807
    %v809 = vlaneseq
    %v810 = vshrl.u32 %v809, 7
    %v811 = vsub.s32 %v808, %v810
    %v812 = vrot.slane %v796, %v811
    %v814 = vunpack.c.l.s4 1966171168
    %v815 = vunpack.c.0.s8 %v814
    %v816 = vlaneseq
    %v817 = vshrl.u32 %v816, 7
    %v818 = vsub.s32 %v815, %v817
    %v819 = vrot.slane %v797, %v818
    %v821 = vunpack.c.l.s4 1966171168
    %v822 = vunpack.c.0.s8 %v821
    %v823 = vlaneseq
    %v824 = vshrl.u32 %v823, 7
    %v825 = vsub.s32 %v822, %v824
    %v826 = vrot.slane %v798, %v825
    %v827 = vcombine.low %v805, %v812
    %v828 = vcombine.low %v819, %v826
    %v830 = vunpack.c.l.s4 1966171168
    %v831 = vunpack.c.0.s8 %v830
    %v832 = vlaneseq
    %v833 = vshrl.u32 %v832, 7
    %v834 = vsub.s32 %v831, %v833
    %v835 = vrot.slane %v827, %v834
    %v837 = vunpack.c.l.s4 1966171168
    %v838 = vunpack.c.0.s8 %v837
    %v839 = vlaneseq
    %v840 = vshrl.u32 %v839, 7
    %v841 = vsub.s32 %v838, %v840
    %v842 = vrot.slane %v828, %v841
    %v843 = vcombine.low %v835, %v842
    %v844 = vcombine.low %v284, %v288
    %v845 = vcombine.low %v292, %v296
    %v846 = vcombine.low %v300, %v304
    %v847 = vcombine.low %v308, %v312
    %v849 = vunpack.c.l.s4 1966171168
    %v850 = vunpack.c.0.s8 %v849
    %v851 = vlaneseq
    %v852 = vshrl.u32 %v851, 7
    %v853 = vsub.s32 %v850, %v852
    %v854 = vrot.slane %v844, %v853
    %v856 = vunpack.c.l.s4 1966171168
    %v857 = vunpack.c.0.s8 %v856
    %v858 = vlaneseq
    %v859 = vshrl.u32 %v858, 7
    %v860 = vsub.s32 %v857, %v859
    %v861 = vrot.slane %v845, %v860
    %v863 = vunpack.c.l.s4 1966171168
    %v864 = vunpack.c.0.s8 %v863
    %v865 = vlaneseq
    %v866 = vshrl.u32 %v865, 7
    %v867 = vsub.s32 %v864, %v866
    %v868 = vrot.slane %v846, %v867
    %v870 = vunpack.c.l.s4 1966171168
    %v871 = vunpack.c.0.s8 %v870
    %v872 = vlaneseq
    %v873 = vshrl.u32 %v872, 7
    %v874 = vsub.s32 %v871, %v873
    %v875 = vrot.slane %v847, %v874
    %v876 = vcombine.low %v854, %v861
    %v877 = vcombine.low %v868, %v875
    %v879 = vunpack.c.l.s4 1966171168
    %v880 = vunpack.c.0.s8 %v879
    %v881 = vlaneseq
    %v882 = vshrl.u32 %v881, 7
    %v883 = vsub.s32 %v880, %v882
    %v884 = vrot.slane %v876, %v883
    %v886 = vunpack.c.l.s4 1966171168
    %v887 = vunpack.c.0.s8 %v886
    %v888 = vlaneseq
    %v889 = vshrl.u32 %v888, 7
    %v890 = vsub.s32 %v887, %v889
    %v891 = vrot.slane %v877, %v890
    %v892 = vcombine.low %v884, %v891
    %v893 = vcombine.low %v316, %v320
    %v894 = vcombine.low %v324, %v328
    %v895 = vcombine.low %v332, %v336
    %v896 = vcombine.low %v340, %v344
    %v898 = vunpack.c.l.s4 1966171168
    %v899 = vunpack.c.0.s8 %v898
    %v900 = vlaneseq
    %v901 = vshrl.u32 %v900, 7
    %v902 = vsub.s32 %v899, %v901
    %v903 = vrot.slane %v893, %v902
    %v905 = vunpack.c.l.s4 1966171168
    %v906 = vunpack.c.0.s8 %v905
    %v907 = vlaneseq
    %v908 = vshrl.u32 %v907, 7
    %v909 = vsub.s32 %v906, %v908
    %v910 = vrot.slane %v894, %v909
    %v912 = vunpack.c.l.s4 1966171168
    %v913 = vunpack.c.0.s8 %v912
    %v914 = vlaneseq
    %v915 = vshrl.u32 %v914, 7
    %v916 = vsub.s32 %v913, %v915
    %v917 = vrot.slane %v895, %v916
    %v919 = vunpack.c.l.s4 1966171168
    %v920 = vunpack.c.0.s8 %v919
    %v921 = vlaneseq
    %v922 = vshrl.u32 %v921, 7
    %v923 = vsub.s32 %v920, %v922
    %v924 = vrot.slane %v896, %v923
    %v925 = vcombine.low %v903, %v910
    %v926 = vcombine.low %v917, %v924
    %v928 = vunpack.c.l.s4 1966171168
    %v929 = vunpack.c.0.s8 %v928
    %v930 = vlaneseq
    %v931 = vshrl.u32 %v930, 7
    %v932 = vsub.s32 %v929, %v931
    %v933 = vrot.slane %v925, %v932
    %v935 = vunpack.c.l.s4 1966171168
    %v936 = vunpack.c.0.s8 %v935
    %v937 = vlaneseq
    %v938 = vshrl.u32 %v937, 7
    %v939 = vsub.s32 %v936, %v938
    %v940 = vrot.slane %v926, %v939
    %v941 = vcombine.low %v933, %v940
    %v942 = vcombine.low %v348, %v352
    %v943 = vcombine.low %v356, %v360
    %v944 = vcombine.low %v364, %v368
    %v945 = vcombine.low %v372, %v376
    %v947 = vunpack.c.l.s4 1966171168
    %v948 = vunpack.c.0.s8 %v947
    %v949 = vlaneseq
    %v950 = vshrl.u32 %v949, 7
    %v951 = vsub.s32 %v948, %v950
    %v952 = vrot.slane %v942, %v951
    %v954 = vunpack.c.l.s4 1966171168
    %v955 = vunpack.c.0.s8 %v954
    %v956 = vlaneseq
    %v957 = vshrl.u32 %v956, 7
    %v958 = vsub.s32 %v955, %v957
    %v959 = vrot.slane %v943, %v958
    %v961 = vunpack.c.l.s4 1966171168
    %v962 = vunpack.c.0.s8 %v961
    %v963 = vlaneseq
    %v964 = vshrl.u32 %v963, 7
    %v965 = vsub.s32 %v962, %v964
    %v966 = vrot.slane %v944, %v965
    %v968 = vunpack.c.l.s4 1966171168
    %v969 = vunpack.c.0.s8 %v968
    %v970 = vlaneseq
    %v971 = vshrl.u32 %v970, 7
    %v972 = vsub.s32 %v969, %v971
    %v973 = vrot.slane %v945, %v972
    %v974 = vcombine.low %v952, %v959
    %v975 = vcombine.low %v966, %v973
    %v977 = vunpack.c.l.s4 1966171168
    %v978 = vunpack.c.0.s8 %v977
    %v979 = vlaneseq
    %v980 = vshrl.u32 %v979, 7
    %v981 = vsub.s32 %v978, %v980
    %v982 = vrot.slane %v974, %v981
    %v984 = vunpack.c.l.s4 1966171168
    %v985 = vunpack.c.0.s8 %v984
    %v986 = vlaneseq
    %v987 = vshrl.u32 %v986, 7
    %v988 = vsub.s32 %v985, %v987
    %v989 = vrot.slane %v975, %v988
    %v990 = vcombine.low %v982, %v989
    %v991 = vcombine.low %v380, %v384
    %v992 = vcombine.low %v388, %v392
    %v993 = vcombine.low %v396, %v400
    %v994 = vcombine.low %v404, %v408
    %v996 = vunpack.c.l.s4 1966171168
    %v997 = vunpack.c.0.s8 %v996
    %v998 = vlaneseq
    %v999 = vshrl.u32 %v998, 7
    %v1000 = vsub.s32 %v997, %v999
    %v1001 = vrot.slane %v991, %v1000
    %v1003 = vunpack.c.l.s4 1966171168
    %v1004 = vunpack.c.0.s8 %v1003
    %v1005 = vlaneseq
    %v1006 = vshrl.u32 %v1005, 7
    %v1007 = vsub.s32 %v1004, %v1006
    %v1008 = vrot.slane %v992, %v1007
    %v1010 = vunpack.c.l.s4 1966171168
    %v1011 = vunpack.c.0.s8 %v1010
    %v1012 = vlaneseq
    %v1013 = vshrl.u32 %v1012, 7
    %v1014 = vsub.s32 %v1011, %v1013
    %v1015 = vrot.slane %v993, %v1014
    %v1017 = vunpack.c.l.s4 1966171168
    %v1018 = vunpack.c.0.s8 %v1017
    %v1019 = vlaneseq
    %v1020 = vshrl.u32 %v1019, 7
    %v1021 = vsub.s32 %v1018, %v1020
    %v1022 = vrot.slane %v994, %v1021
    %v1023 = vcombine.low %v1001, %v1008
    %v1024 = vcombine.low %v1015, %v1022
    %v1026 = vunpack.c.l.s4 1966171168
    %v1027 = vunpack.c.0.s8 %v1026
    %v1028 = vlaneseq
    %v1029 = vshrl.u32 %v1028, 7
    %v1030 = vsub.s32 %v1027, %v1029
    %v1031 = vrot.slane %v1023, %v1030
    %v1033 = vunpack.c.l.s4 1966171168
    %v1034 = vunpack.c.0.s8 %v1033
    %v1035 = vlaneseq
    %v1036 = vshrl.u32 %v1035, 7
    %v1037 = vsub.s32 %v1034, %v1036
    %v1038 = vrot.slane %v1024, %v1037
    %v1039 = vcombine.low %v1031, %v1038
    %v1040 = vcombine.low %v412, %v416
    %v1041 = vcombine.low %v420, %v424
    %v1042 = vcombine.low %v428, %v432
    %v1043 = vcombine.low %v436, %v440
    %v1045 = vunpack.c.l.s4 1966171168
    %v1046 = vunpack.c.0.s8 %v1045
    %v1047 = vlaneseq
    %v1048 = vshrl.u32 %v1047, 7
    %v1049 = vsub.s32 %v1046, %v1048
    %v1050 = vrot.slane %v1040, %v1049
    %v1052 = vunpack.c.l.s4 1966171168
    %v1053 = vunpack.c.0.s8 %v1052
    %v1054 = vlaneseq
    %v1055 = vshrl.u32 %v1054, 7
    %v1056 = vsub.s32 %v1053, %v1055
    %v1057 = vrot.slane %v1041, %v1056
    %v1059 = vunpack.c.l.s4 1966171168
    %v1060 = vunpack.c.0.s8 %v1059
    %v1061 = vlaneseq
    %v1062 = vshrl.u32 %v1061, 7
    %v1063 = vsub.s32 %v1060, %v1062
    %v1064 = vrot.slane %v1042, %v1063
    %v1066 = vunpack.c.l.s4 1966171168
    %v1067 = vunpack.c.0.s8 %v1066
    %v1068 = vlaneseq
    %v1069 = vshrl.u32 %v1068, 7
    %v1070 = vsub.s32 %v1067, %v1069
    %v1071 = vrot.slane %v1043, %v1070
    %v1072 = vcombine.low %v1050, %v1057
    %v1073 = vcombine.low %v1064, %v1071
    %v1075 = vunpack.c.l.s4 1966171168
    %v1076 = vunpack.c.0.s8 %v1075
    %v1077 = vlaneseq
    %v1078 = vshrl.u32 %v1077, 7
    %v1079 = vsub.s32 %v1076, %v1078
    %v1080 = vrot.slane %v1072, %v1079
    %v1082 = vunpack.c.l.s4 1966171168
    %v1083 = vunpack.c.0.s8 %v1082
    %v1084 = vlaneseq
    %v1085 = vshrl.u32 %v1084, 7
    %v1086 = vsub.s32 %v1083, %v1085
    %v1087 = vrot.slane %v1073, %v1086
    %v1088 = vcombine.low %v1080, %v1087
    %v1089 = vcombine.low %v444, %v448
    %v1090 = vcombine.low %v452, %v456
    %v1091 = vcombine.low %v460, %v464
    %v1092 = vcombine.low %v468, %v472
    %v1094 = vunpack.c.l.s4 1966171168
    %v1095 = vunpack.c.0.s8 %v1094
    %v1096 = vlaneseq
    %v1097 = vshrl.u32 %v1096, 7
    %v1098 = vsub.s32 %v1095, %v1097
    %v1099 = vrot.slane %v1089, %v1098
    %v1101 = vunpack.c.l.s4 1966171168
    %v1102 = vunpack.c.0.s8 %v1101
    %v1103 = vlaneseq
    %v1104 = vshrl.u32 %v1103, 7
    %v1105 = vsub.s32 %v1102, %v1104
    %v1106 = vrot.slane %v1090, %v1105
    %v1108 = vunpack.c.l.s4 1966171168
    %v1109 = vunpack.c.0.s8 %v1108
    %v1110 = vlaneseq
    %v1111 = vshrl.u32 %v1110, 7
    %v1112 = vsub.s32 %v1109, %v1111
    %v1113 = vrot.slane %v1091, %v1112
    %v1115 = vunpack.c.l.s4 1966171168
    %v1116 = vunpack.c.0.s8 %v1115
    %v1117 = vlaneseq
    %v1118 = vshrl.u32 %v1117, 7
    %v1119 = vsub.s32 %v1116, %v1118
    %v1120 = vrot.slane %v1092, %v1119
    %v1121 = vcombine.low %v1099, %v1106
    %v1122 = vcombine.low %v1113, %v1120
    %v1124 = vunpack.c.l.s4 1966171168
    %v1125 = vunpack.c.0.s8 %v1124
    %v1126 = vlaneseq
    %v1127 = vshrl.u32 %v1126, 7
    %v1128 = vsub.s32 %v1125, %v1127
    %v1129 = vrot.slane %v1121, %v1128
    %v1131 = vunpack.c.l.s4 1966171168
    %v1132 = vunpack.c.0.s8 %v1131
    %v1133 = vlaneseq
    %v1134 = vshrl.u32 %v1133, 7
    %v1135 = vsub.s32 %v1132, %v1134
    %v1136 = vrot.slane %v1122, %v1135
    %v1137 = vcombine.low %v1129, %v1136
    %v1138 = vcombine.low %v476, %v480
    %v1139 = vcombine.low %v484, %v488
    %v1140 = vcombine.low %v492, %v496
    %v1141 = vcombine.low %v500, %v504
    %v1143 = vunpack.c.l.s4 1966171168
    %v1144 = vunpack.c.0.s8 %v1143
    %v1145 = vlaneseq
    %v1146 = vshrl.u32 %v1145, 7
    %v1147 = vsub.s32 %v1144, %v1146
    %v1148 = vrot.slane %v1138, %v1147
    %v1150 = vunpack.c.l.s4 1966171168
    %v1151 = vunpack.c.0.s8 %v1150
    %v1152 = vlaneseq
    %v1153 = vshrl.u32 %v1152, 7
    %v1154 = vsub.s32 %v1151, %v1153
    %v1155 = vrot.slane %v1139, %v1154
    %v1157 = vunpack.c.l.s4 1966171168
    %v1158 = vunpack.c.0.s8 %v1157
    %v1159 = vlaneseq
    %v1160 = vshrl.u32 %v1159, 7
    %v1161 = vsub.s32 %v1158, %v1160
    %v1162 = vrot.slane %v1140, %v1161
    %v1164 = vunpack.c.l.s4 1966171168
    %v1165 = vunpack.c.0.s8 %v1164
    %v1166 = vlaneseq
    %v1167 = vshrl.u32 %v1166, 7
    %v1168 = vsub.s32 %v1165, %v1167
    %v1169 = vrot.slane %v1141, %v1168
    %v1170 = vcombine.low %v1148, %v1155
    %v1171 = vcombine.low %v1162, %v1169
    %v1173 = vunpack.c.l.s4 1966171168
    %v1174 = vunpack.c.0.s8 %v1173
    %v1175 = vlaneseq
    %v1176 = vshrl.u32 %v1175, 7
    %v1177 = vsub.s32 %v1174, %v1176
    %v1178 = vrot.slane %v1170, %v1177
    %v1180 = vunpack.c.l.s4 1966171168
    %v1181 = vunpack.c.0.s8 %v1180
    %v1182 = vlaneseq
    %v1183 = vshrl.u32 %v1182, 7
    %v1184 = vsub.s32 %v1181, %v1183
    %v1185 = vrot.slane %v1171, %v1184
    %v1186 = vcombine.low %v1178, %v1185
    %v1187 = vcombine.low %v508, %v512
    %v1188 = vcombine.low %v516, %v520
    %v1189 = vcombine.low %v524, %v528
    %v1190 = vcombine.low %v532, %v536
    %v1192 = vunpack.c.l.s4 1966171168
    %v1193 = vunpack.c.0.s8 %v1192
    %v1194 = vlaneseq
    %v1195 = vshrl.u32 %v1194, 7
    %v1196 = vsub.s32 %v1193, %v1195
    %v1197 = vrot.slane %v1187, %v1196
    %v1199 = vunpack.c.l.s4 1966171168
    %v1200 = vunpack.c.0.s8 %v1199
    %v1201 = vlaneseq
    %v1202 = vshrl.u32 %v1201, 7
    %v1203 = vsub.s32 %v1200, %v1202
    %v1204 = vrot.slane %v1188, %v1203
    %v1206 = vunpack.c.l.s4 1966171168
    %v1207 = vunpack.c.0.s8 %v1206
    %v1208 = vlaneseq
    %v1209 = vshrl.u32 %v1208, 7
    %v1210 = vsub.s32 %v1207, %v1209
    %v1211 = vrot.slane %v1189, %v1210
    %v1213 = vunpack.c.l.s4 1966171168
    %v1214 = vunpack.c.0.s8 %v1213
    %v1215 = vlaneseq
    %v1216 = vshrl.u32 %v1215, 7
    %v1217 = vsub.s32 %v1214, %v1216
    %v1218 = vrot.slane %v1190, %v1217
    %v1219 = vcombine.low %v1197, %v1204
    %v1220 = vcombine.low %v1211, %v1218
    %v1222 = vunpack.c.l.s4 1966171168
    %v1223 = vunpack.c.0.s8 %v1222
    %v1224 = vlaneseq
    %v1225 = vshrl.u32 %v1224, 7
    %v1226 = vsub.s32 %v1223, %v1225
    %v1227 = vrot.slane %v1219, %v1226
    %v1229 = vunpack.c.l.s4 1966171168
    %v1230 = vunpack.c.0.s8 %v1229
    %v1231 = vlaneseq
    %v1232 = vshrl.u32 %v1231, 7
    %v1233 = vsub.s32 %v1230, %v1232
    %v1234 = vrot.slane %v1220, %v1233
    %v1235 = vcombine.low %v1227, %v1234
    %v1236 = vcombine.low %v540, %v544
    %v1237 = vcombine.low %v548, %v552
    %v1238 = vcombine.low %v556, %v560
    %v1239 = vcombine.low %v564, %v568
    %v1241 = vunpack.c.l.s4 1966171168
    %v1242 = vunpack.c.0.s8 %v1241
    %v1243 = vlaneseq
    %v1244 = vshrl.u32 %v1243, 7
    %v1245 = vsub.s32 %v1242, %v1244
    %v1246 = vrot.slane %v1236, %v1245
    %v1248 = vunpack.c.l.s4 1966171168
    %v1249 = vunpack.c.0.s8 %v1248
    %v1250 = vlaneseq
    %v1251 = vshrl.u32 %v1250, 7
    %v1252 = vsub.s32 %v1249, %v1251
    %v1253 = vrot.slane %v1237, %v1252
    %v1255 = vunpack.c.l.s4 1966171168
    %v1256 = vunpack.c.0.s8 %v1255
    %v1257 = vlaneseq
    %v1258 = vshrl.u32 %v1257, 7
    %v1259 = vsub.s32 %v1256, %v1258
    %v1260 = vrot.slane %v1238, %v1259
    %v1262 = vunpack.c.l.s4 1966171168
    %v1263 = vunpack.c.0.s8 %v1262
    %v1264 = vlaneseq
    %v1265 = vshrl.u32 %v1264, 7
    %v1266 = vsub.s32 %v1263, %v1265
    %v1267 = vrot.slane %v1239, %v1266
    %v1268 = vcombine.low %v1246, %v1253
    %v1269 = vcombine.low %v1260, %v1267
    %v1271 = vunpack.c.l.s4 1966171168
    %v1272 = vunpack.c.0.s8 %v1271
    %v1273 = vlaneseq
    %v1274 = vshrl.u32 %v1273, 7
    %v1275 = vsub.s32 %v1272, %v1274
    %v1276 = vrot.slane %v1268, %v1275
    %v1278 = vunpack.c.l.s4 1966171168
    %v1279 = vunpack.c.0.s8 %v1278
    %v1280 = vlaneseq
    %v1281 = vshrl.u32 %v1280, 7
    %v1282 = vsub.s32 %v1279, %v1281
    %v1283 = vrot.slane %v1269, %v1282
    %v1284 = vcombine.low %v1276, %v1283
    %v1285 = vcombine.low %v572, %v576
    %v1286 = vcombine.low %v580, %v584
    %v1287 = vcombine.low %v588, %v592
    %v1288 = vcombine.low %v596, %v600
    %v1290 = vunpack.c.l.s4 1966171168
    %v1291 = vunpack.c.0.s8 %v1290
    %v1292 = vlaneseq
    %v1293 = vshrl.u32 %v1292, 7
    %v1294 = vsub.s32 %v1291, %v1293
    %v1295 = vrot.slane %v1285, %v1294
    %v1297 = vunpack.c.l.s4 1966171168
    %v1298 = vunpack.c.0.s8 %v1297
    %v1299 = vlaneseq
    %v1300 = vshrl.u32 %v1299, 7
    %v1301 = vsub.s32 %v1298, %v1300
    %v1302 = vrot.slane %v1286, %v1301
    %v1304 = vunpack.c.l.s4 1966171168
    %v1305 = vunpack.c.0.s8 %v1304
    %v1306 = vlaneseq
    %v1307 = vshrl.u32 %v1306, 7
    %v1308 = vsub.s32 %v1305, %v1307
    %v1309 = vrot.slane %v1287, %v1308
    %v1311 = vunpack.c.l.s4 1966171168
    %v1312 = vunpack.c.0.s8 %v1311
    %v1313 = vlaneseq
    %v1314 = vshrl.u32 %v1313, 7
    %v1315 = vsub.s32 %v1312, %v1314
    %v1316 = vrot.slane %v1288, %v1315
    %v1317 = vcombine.low %v1295, %v1302
    %v1318 = vcombine.low %v1309, %v1316
    %v1320 = vunpack.c.l.s4 1966171168
    %v1321 = vunpack.c.0.s8 %v1320
    %v1322 = vlaneseq
    %v1323 = vshrl.u32 %v1322, 7
    %v1324 = vsub.s32 %v1321, %v1323
    %v1325 = vrot.slane %v1317, %v1324
    %v1327 = vunpack.c.l.s4 1966171168
    %v1328 = vunpack.c.0.s8 %v1327
    %v1329 = vlaneseq
    %v1330 = vshrl.u32 %v1329, 7
    %v1331 = vsub.s32 %v1328, %v1330
    %v1332 = vrot.slane %v1318, %v1331
    %v1333 = vcombine.low %v1325, %v1332
    %v1334 = vcombine.low %v604, %v608
    %v1335 = vcombine.low %v612, %v616
    %v1336 = vcombine.low %v620, %v624
    %v1337 = vcombine.low %v628, %v632
    %v1339 = vunpack.c.l.s4 1966171168
    %v1340 = vunpack.c.0.s8 %v1339
    %v1341 = vlaneseq
    %v1342 = vshrl.u32 %v1341, 7
    %v1343 = vsub.s32 %v1340, %v1342
    %v1344 = vrot.slane %v1334, %v1343
    %v1346 = vunpack.c.l.s4 1966171168
    %v1347 = vunpack.c.0.s8 %v1346
    %v1348 = vlaneseq
    %v1349 = vshrl.u32 %v1348, 7
    %v1350 = vsub.s32 %v1347, %v1349
    %v1351 = vrot.slane %v1335, %v1350
    %v1353 = vunpack.c.l.s4 1966171168
    %v1354 = vunpack.c.0.s8 %v1353
    %v1355 = vlaneseq
    %v1356 = vshrl.u32 %v1355, 7
    %v1357 = vsub.s32 %v1354, %v1356
    %v1358 = vrot.slane %v1336, %v1357
    %v1360 = vunpack.c.l.s4 1966171168
    %v1361 = vunpack.c.0.s8 %v1360
    %v1362 = vlaneseq
    %v1363 = vshrl.u32 %v1362, 7
    %v1364 = vsub.s32 %v1361, %v1363
    %v1365 = vrot.slane %v1337, %v1364
    %v1366 = vcombine.low %v1344, %v1351
    %v1367 = vcombine.low %v1358, %v1365
    %v1369 = vunpack.c.l.s4 1966171168
    %v1370 = vunpack.c.0.s8 %v1369
    %v1371 = vlaneseq
    %v1372 = vshrl.u32 %v1371, 7
    %v1373 = vsub.s32 %v1370, %v1372
    %v1374 = vrot.slane %v1366, %v1373
    %v1376 = vunpack.c.l.s4 1966171168
    %v1377 = vunpack.c.0.s8 %v1376
    %v1378 = vlaneseq
    %v1379 = vshrl.u32 %v1378, 7
    %v1380 = vsub.s32 %v1377, %v1379
    %v1381 = vrot.slane %v1367, %v1380
    %v1382 = vcombine.low %v1374, %v1381
    %v1383 = vcombine.low %v636, %v640
    %v1384 = vcombine.low %v644, %v648
    %v1385 = vcombine.low %v652, %v656
    %v1386 = vcombine.low %v660, %v664
    %v1388 = vunpack.c.l.s4 1966171168
    %v1389 = vunpack.c.0.s8 %v1388
    %v1390 = vlaneseq
    %v1391 = vshrl.u32 %v1390, 7
    %v1392 = vsub.s32 %v1389, %v1391
    %v1393 = vrot.slane %v1383, %v1392
    %v1395 = vunpack.c.l.s4 1966171168
    %v1396 = vunpack.c.0.s8 %v1395
    %v1397 = vlaneseq
    %v1398 = vshrl.u32 %v1397, 7
    %v1399 = vsub.s32 %v1396, %v1398
    %v1400 = vrot.slane %v1384, %v1399
    %v1402 = vunpack.c.l.s4 1966171168
    %v1403 = vunpack.c.0.s8 %v1402
    %v1404 = vlaneseq
    %v1405 = vshrl.u32 %v1404, 7
    %v1406 = vsub.s32 %v1403, %v1405
    %v1407 = vrot.slane %v1385, %v1406
    %v1409 = vunpack.c.l.s4 1966171168
    %v1410 = vunpack.c.0.s8 %v1409
    %v1411 = vlaneseq
    %v1412 = vshrl.u32 %v1411, 7
    %v1413 = vsub.s32 %v1410, %v1412
    %v1414 = vrot.slane %v1386, %v1413
    %v1415 = vcombine.low %v1393, %v1400
    %v1416 = vcombine.low %v1407, %v1414
    %v1418 = vunpack.c.l.s4 1966171168
    %v1419 = vunpack.c.0.s8 %v1418
    %v1420 = vlaneseq
    %v1421 = vshrl.u32 %v1420, 7
    %v1422 = vsub.s32 %v1419, %v1421
    %v1423 = vrot.slane %v1415, %v1422
    %v1425 = vunpack.c.l.s4 1966171168
    %v1426 = vunpack.c.0.s8 %v1425
    %v1427 = vlaneseq
    %v1428 = vshrl.u32 %v1427, 7
    %v1429 = vsub.s32 %v1426, %v1428
    %v1430 = vrot.slane %v1416, %v1429
    %v1431 = vcombine.low %v1423, %v1430
    %v1432 = vcombine.low %v668, %v672
    %v1433 = vcombine.low %v676, %v680
    %v1434 = vcombine.low %v684, %v688
    %v1435 = vcombine.low %v692, %v696
    %v1437 = vunpack.c.l.s4 1966171168
    %v1438 = vunpack.c.0.s8 %v1437
    %v1439 = vlaneseq
    %v1440 = vshrl.u32 %v1439, 7
    %v1441 = vsub.s32 %v1438, %v1440
    %v1442 = vrot.slane %v1432, %v1441
    %v1444 = vunpack.c.l.s4 1966171168
    %v1445 = vunpack.c.0.s8 %v1444
    %v1446 = vlaneseq
    %v1447 = vshrl.u32 %v1446, 7
    %v1448 = vsub.s32 %v1445, %v1447
    %v1449 = vrot.slane %v1433, %v1448
    %v1451 = vunpack.c.l.s4 1966171168
    %v1452 = vunpack.c.0.s8 %v1451
    %v1453 = vlaneseq
    %v1454 = vshrl.u32 %v1453, 7
    %v1455 = vsub.s32 %v1452, %v1454
    %v1456 = vrot.slane %v1434, %v1455
    %v1458 = vunpack.c.l.s4 1966171168
    %v1459 = vunpack.c.0.s8 %v1458
    %v1460 = vlaneseq
    %v1461 = vshrl.u32 %v1460, 7
    %v1462 = vsub.s32 %v1459, %v1461
    %v1463 = vrot.slane %v1435, %v1462
    %v1464 = vcombine.low %v1442, %v1449
    %v1465 = vcombine.low %v1456, %v1463
    %v1467 = vunpack.c.l.s4 1966171168
    %v1468 = vunpack.c.0.s8 %v1467
    %v1469 = vlaneseq
    %v1470 = vshrl.u32 %v1469, 7
    %v1471 = vsub.s32 %v1468, %v1470
    %v1472 = vrot.slane %v1464, %v1471
    %v1474 = vunpack.c.l.s4 1966171168
    %v1475 = vunpack.c.0.s8 %v1474
    %v1476 = vlaneseq
    %v1477 = vshrl.u32 %v1476, 7
    %v1478 = vsub.s32 %v1475, %v1477
    %v1479 = vrot.slane %v1465, %v1478
    %v1480 = vcombine.low %v1472, %v1479
    %1481 = vset.pattern.permute.xlu0 0
    %1482 = vperm.xlu0 %1481, %v745
    %v1483 = vpop.permute.xlu0 %1482
    %1484 = vset.pattern.permute.xlu0 0
    %1485 = vperm.xlu0 %1484, %v794
    %v1486 = vpop.permute.xlu0 %1485
    %1487 = vset.pattern.permute.xlu0 0
    %1488 = vperm.xlu0 %1487, %v843
    %v1489 = vpop.permute.xlu0 %1488
    %1490 = vset.pattern.permute.xlu0 0
    %1491 = vperm.xlu0 %1490, %v892
    %v1492 = vpop.permute.xlu0 %1491
    %1493 = vset.pattern.permute.xlu0 0
    %1494 = vperm.xlu0 %1493, %v941
    %v1495 = vpop.permute.xlu0 %1494
    %1496 = vset.pattern.permute.xlu0 0
    %1497 = vperm.xlu0 %1496, %v990
    %v1498 = vpop.permute.xlu0 %1497
    %1499 = vset.pattern.permute.xlu0 0
    %1500 = vperm.xlu0 %1499, %v1039
    %v1501 = vpop.permute.xlu0 %1500
    %1502 = vset.pattern.permute.xlu0 0
    %1503 = vperm.xlu0 %1502, %v1088
    %v1504 = vpop.permute.xlu0 %1503
    %1505 = vset.pattern.permute.xlu0 0
    %1506 = vperm.xlu0 %1505, %v1137
    %v1507 = vpop.permute.xlu0 %1506
    %1508 = vset.pattern.permute.xlu0 0
    %1509 = vperm.xlu0 %1508, %v1186
    %v1510 = vpop.permute.xlu0 %1509
    %1511 = vset.pattern.permute.xlu0 0
    %1512 = vperm.xlu0 %1511, %v1235
    %v1513 = vpop.permute.xlu0 %1512
    %1514 = vset.pattern.permute.xlu0 0
    %1515 = vperm.xlu0 %1514, %v1284
    %v1516 = vpop.permute.xlu0 %1515
    %1517 = vset.pattern.permute.xlu0 0
    %1518 = vperm.xlu0 %1517, %v1333
    %v1519 = vpop.permute.xlu0 %1518
    %1520 = vset.pattern.permute.xlu0 0
    %1521 = vperm.xlu0 %1520, %v1382
    %v1522 = vpop.permute.xlu0 %1521
    %1523 = vset.pattern.permute.xlu0 0
    %1524 = vperm.xlu0 %1523, %v1431
    %v1525 = vpop.permute.xlu0 %1524
    %1526 = vset.pattern.permute.xlu0 0
    %1527 = vperm.xlu0 %1526, %v1480
    %v1528 = vpop.permute.xlu0 %1527
    %v1529 = vlaneseq
    %v1530 = vand.u32 %v1529, 127
    %v1531 = vlaneseq
    %v1532 = vshrl.u32 %v1531, 7
    %v1533 = vsub.s32 %v1530, %v1532
    %v1534 = vrot.slane %v1483, %v1533
    %v1535 = vadd.s32 %v1530, 4294967288
    %v1536 = vlaneseq
    %v1537 = vshrl.u32 %v1536, 7
    %v1538 = vsub.s32 %v1535, %v1537
    %v1539 = vrot.slane %v1486, %v1538
    %vm1540 = vcmask 130112
    %v1541 = vsel %vm1540, %v1539, %v1534
    %v1542 = vadd.s32 %v1530, 4294967280
    %v1543 = vlaneseq
    %v1544 = vshrl.u32 %v1543, 7
    %v1545 = vsub.s32 %v1542, %v1544
    %v1546 = vrot.slane %v1489, %v1545
    %vm1547 = vcmask 195712
    %v1548 = vsel %vm1547, %v1546, %v1541
    %v1549 = vadd.s32 %v1530, 4294967272
    %v1550 = vlaneseq
    %v1551 = vshrl.u32 %v1550, 7
    %v1552 = vsub.s32 %v1549, %v1551
    %v1553 = vrot.slane %v1492, %v1552
    %vm1554 = vcmask 261312
    %v1555 = vsel %vm1554, %v1553, %v1548
    %v1556 = vadd.s32 %v1530, 4294967264
    %v1557 = vlaneseq
    %v1558 = vshrl.u32 %v1557, 7
    %v1559 = vsub.s32 %v1556, %v1558
    %v1560 = vrot.slane %v1495, %v1559
    %vm1561 = vcmask 326912
    %v1562 = vsel %vm1561, %v1560, %v1555
    %v1563 = vadd.s32 %v1530, 4294967256
    %v1564 = vlaneseq
    %v1565 = vshrl.u32 %v1564, 7
    %v1566 = vsub.s32 %v1563, %v1565
    %v1567 = vrot.slane %v1498, %v1566
    %vm1568 = vcmask 392512
    %v1569 = vsel %vm1568, %v1567, %v1562
    %v1570 = vadd.s32 %v1530, 4294967248
    %v1571 = vlaneseq
    %v1572 = vshrl.u32 %v1571, 7
    %v1573 = vsub.s32 %v1570, %v1572
    %v1574 = vrot.slane %v1501, %v1573
    %vm1575 = vcmask 458112
    %v1576 = vsel %vm1575, %v1574, %v1569
    %v1577 = vadd.s32 %v1530, 4294967240
    %v1578 = vlaneseq
    %v1579 = vshrl.u32 %v1578, 7
    %v1580 = vsub.s32 %v1577, %v1579
    %v1581 = vrot.slane %v1504, %v1580
    %vm1582 = vcmask 523712
    %v1583 = vsel %vm1582, %v1581, %v1576
    %v1584 = vadd.s32 %v1530, 4294967232
    %v1585 = vlaneseq
    %v1586 = vshrl.u32 %v1585, 7
    %v1587 = vsub.s32 %v1584, %v1586
    %v1588 = vrot.slane %v1507, %v1587
    %vm1589 = vcmask 589312
    %v1590 = vsel %vm1589, %v1588, %v1583
    %v1591 = vadd.s32 %v1530, 4294967224
    %v1592 = vlaneseq
    %v1593 = vshrl.u32 %v1592, 7
    %v1594 = vsub.s32 %v1591, %v1593
    %v1595 = vrot.slane %v1510, %v1594
    %vm1596 = vcmask 654912
    %v1597 = vsel %vm1596, %v1595, %v1590
    %v1598 = vadd.s32 %v1530, 4294967216
    %v1599 = vlaneseq
    %v1600 = vshrl.u32 %v1599, 7
    %v1601 = vsub.s32 %v1598, %v1600
    %v1602 = vrot.slane %v1513, %v1601
    %vm1603 = vcmask 720512
    %v1604 = vsel %vm1603, %v1602, %v1597
    %v1605 = vadd.s32 %v1530, 4294967208
    %v1606 = vlaneseq
    %v1607 = vshrl.u32 %v1606, 7
    %v1608 = vsub.s32 %v1605, %v1607
    %v1609 = vrot.slane %v1516, %v1608
    %vm1610 = vcmask 786112
    %v1611 = vsel %vm1610, %v1609, %v1604
    %v1612 = vadd.s32 %v1530, 4294967200
    %v1613 = vlaneseq
    %v1614 = vshrl.u32 %v1613, 7
    %v1615 = vsub.s32 %v1612, %v1614
    %v1616 = vrot.slane %v1519, %v1615
    %vm1617 = vcmask 851712
    %v1618 = vsel %vm1617, %v1616, %v1611
    %v1619 = vadd.s32 %v1530, 4294967192
    %v1620 = vlaneseq
    %v1621 = vshrl.u32 %v1620, 7
    %v1622 = vsub.s32 %v1619, %v1621
    %v1623 = vrot.slane %v1522, %v1622
    %vm1624 = vcmask 917312
    %v1625 = vsel %vm1624, %v1623, %v1618
    %v1626 = vadd.s32 %v1530, 4294967184
    %v1627 = vlaneseq
    %v1628 = vshrl.u32 %v1627, 7
    %v1629 = vsub.s32 %v1626, %v1628
    %v1630 = vrot.slane %v1525, %v1629
    %vm1631 = vcmask 982912
    %v1632 = vsel %vm1631, %v1630, %v1625
    %v1633 = vadd.s32 %v1530, 4294967176
    %v1634 = vlaneseq
    %v1635 = vshrl.u32 %v1634, 7
    %v1636 = vsub.s32 %v1633, %v1635
    %v1637 = vrot.slane %v1528, %v1636
    %vm1638 = vcmask 1048512
    %v1639 = vsel %vm1638, %v1637, %v1632
    %v1641 = vunpack.c.l.s4 1966171168
    %v1642 = vunpack.c.0.s8 %v1641
    %v1643 = vlaneseq
    %v1644 = vshrl.u32 %v1643, 7
    %v1645 = vsub.s32 %v1642, %v1644
    %v1646 = vrot.slane %v1639, %v1645
    %v1648 = vunpack.c.l.s4 1966171168
    %v1649 = vunpack.c.0.s8 %v1648
    %v1650 = vlaneseq
    %v1651 = vshrl.u32 %v1650, 7
    %v1652 = vsub.s32 %v1649, %v1651
    %v1653 = vrot.slane %v1646, %v1652
    %v1655 = vadd.f32 %v168, %v1653
    %1656 = vst [vmem:[#allocation8] sm:$0x1] %v1655
    // Predicated region
    $region28: #{tpu_custom_call.1} parent=1 // pred_check
      _
    $region29: #{tpu_custom_call.1} parent=1 // pred_check_branch
      %1658 = sbr.rel (0) target = $region31
    $region30: #{tpu_custom_call.1} parent=1 // pred_region
      %s1660 = ssub.s32 16, 16
      %1661 = vsyncadd [#allocation9], %s1660
      %s1663 = sshll.u32 [#allocation8], 4
      %s1664 = int_to_ptr.vmem [resolvable:$true] %s1663
      %1666 = dma.vmem_to_hbm [thread:$0]  %s1664, 16, %s5, [#allocation9]
    $region31: #{tpu_custom_call.1} parent=1 // pred_fallthru
      _
    // Predicated region
    $region32: #{tpu_custom_call.1} parent=1 // pred_check
      _
    $region33: #{tpu_custom_call.1} parent=1 // pred_check_branch
      %1668 = sbr.rel (0) target = $region35
    $region34: #{tpu_custom_call.1} parent=1 // pred_region
      %1669 = dma.done [#allocation9], 16
    $region35: #{tpu_custom_call.1} parent=1 // pred_fallthru
      _
    %1670 = vsyncpa [#allocation9], 1
  %1671 = vsyncmov [#allocation4]
  %s1672 = vpop.sfrf %1671
  %p1673 = scmp.eq.s32.totalorder %s1672, 0
  %p1674 = pneg %p1673
  %1676 = shalt.err (%p1674)
  %s1677 = scalar_lea.sflag [#allocation4], 1
  %1678 = vsyncmov %s1677
  %s1679 = vpop.sfrf %1678
  %p1680 = scmp.eq.s32.totalorder %s1679, 0
  %p1681 = pneg %p1680
  %1683 = shalt.err (%p1681)

</llo_original>
